<compile_context>
chip_gen: v7x
topology: tpu7x:2x2x1
jax: 0.10.0
libtpu: 0.0.40
codegen_flags: <defaults>
</compile_context>

<pallas_src>
import functools
import math

import jax
import jax.numpy as jnp
import numpy as np
from jax.experimental import pallas as pl
from jax.experimental.pallas import tpu as pltpu


# ---------------------------------------------------------------------------
# Fused kernel.  One grid step = `bblk` batch elements.
#   x_ref  : (bblk, d*ho, k1pad)      host-built h-im2col, lanes = kh*wp*cin (zero padded)
#   wsp_ref: (k1pad, wo*cint)         banded spatial weights (kh, kw, cin folded into K)
#   b1_ref : (1, wo*cint)
#   wt_ref : (kt*wo*cint, wo*cout)    block-diagonal temporal weights (kt folded into K)
#   b2_ref : (1, wo*cout)
#   o_ref  : (bblk, do*ho, wo*cout)   lane-dense output
# ---------------------------------------------------------------------------
def _dual_conv3d_kernel(x_ref, wsp_ref, b1_ref, wt_ref, b2_ref, o_ref, *,
                        bblk, d, ho, do, wo, cint, cout, kt, st, dlt, pt, k1pad):
    f32 = jnp.float32
    woc_i = wo * cint
    woc_o = wo * cout

    # ---- stage 1: spatial conv == ONE MXU matmul (K = k1pad) --------------
    # TODO(synk): at production channel counts cast operands to bf16 (keep
    # preferred_element_type=f32) to use the bf16-native MXU on v6e/v7x.
    rows = x_ref[...].reshape(bblk * d * ho, k1pad)
    y = jnp.dot(rows, wsp_ref[...], preferred_element_type=f32) + b1_ref[...]

    # ---- stage 2: temporal conv == ONE MXU matmul (K = kt*woc_i) ----------
    # Depth zero-padding is done in-register (concat of zero rows along the
    # major depth axis) -- no VMEM scratch round trip, no per-step re-zeroing.
    y = y.reshape(bblk, d, ho, woc_i)
    if pt > 0:
        zpad = jnp.zeros((bblk, pt, ho, woc_i), f32)
        y = jnp.concatenate([zpad, y, zpad], axis=1)          # (bblk, dp, ho, woc_i)
    taps = []
    for k in range(kt):
        t0 = k * dlt
        if st == 1:
            taps.append(y[:, t0:t0 + do])
        else:
            # TODO(synk): stride>1 over depth uses a strided value slice; validate lowering.
            taps.append(y[:, t0:t0 + (do - 1) * st + 1:st])
    lhs2 = jnp.concatenate(taps, axis=-1).reshape(bblk * do * ho, kt * woc_i)
    out = jnp.dot(lhs2, wt_ref[...], preferred_element_type=f32) + b2_ref[...]
    o_ref[...] = out.reshape(bblk, do * ho, woc_o).astype(o_ref.dtype)


# ---------------------------------------------------------------------------
# Weight packing: depends only on parameters + spatial size.  Hoist / cache it
# outside the per-step forward in production (addresses the "recomputed every
# call" concern); the demo computes it once and passes it in.
# ---------------------------------------------------------------------------
def pack_dual_conv3d_weights(w1, b1, w2, b2, h, w, *, stride, padding, dilation):
    f32 = jnp.float32
    cin = w1.shape[1]
    cint = w1.shape[0]
    cout = w2.shape[0]
    kh, kw = w1.shape[3], w1.shape[4]
    kt = w2.shape[2]
    _, sh, sw = stride
    _, ph, pw = padding
    _, dlh, dlw = dilation
    wp = w + 2 * pw
    wo = (wp - (dlw * (kw - 1) + 1)) // sw + 1
    wpc = wp * cin
    k1 = kh * wpc
    k1pad = -(-k1 // 128) * 128
    woc_i, woc_o = wo * cint, wo * cout

    # Banded spatial weights, kh taps stacked along K:
    #   wsp[ky*wpc + wi*cin + ci, j*cint + co] = sum_kx [wi == j*sw + kx*dlw] * w1[co,ci,0,ky,kx]
    src = jnp.arange(wo)[:, None] * sw + jnp.arange(kw)[None, :] * dlw     # (wo, kw)
    onehot = (src[:, :, None] == jnp.arange(wp)[None, None, :]).astype(f32)
    w1_t = jnp.transpose(w1.astype(f32)[:, :, 0], (2, 3, 1, 0))            # (kh, kw, cin, cint)
    wsp = jnp.einsum('jkw,ykio->ywijo', onehot, w1_t).reshape(k1, woc_i)
    if k1pad > k1:
        wsp = jnp.pad(wsp, ((0, k1pad - k1), (0, 0)))
    b1f = jnp.tile(b1.astype(f32), wo).reshape(1, woc_i)

    # Block-diagonal temporal weights, kt taps stacked along K:
    #   wt[k*woc_i + j*cint + ci, J*cout + co] = [j==J] * w2[co,ci,k]
    w2_t = jnp.transpose(w2.astype(f32)[:, :, :, 0, 0], (2, 1, 0))         # (kt, cint, cout)
    eye = jnp.eye(wo, dtype=f32)
    wt = jnp.einsum('jJ,kio->kjiJo', eye, w2_t).reshape(kt * woc_i, woc_o)
    b2f = jnp.tile(b2.astype(f32), wo).reshape(1, woc_o)
    return wsp, b1f, wt, b2f


def dual_conv3d_forward(x, w1, b1, w2, b2, *, stride, padding, dilation,
                        packed_weights=None, channels_last_out=False):
    """Mirrors DualConv3d.forward (default use_conv3d=False, skip_time_conv=False).

    x : (b, c, d, h, w) NCDHW float32
    w1: (cint, cin, 1, kh, kw)   b1: (cint,)
    w2: (cout, cint, kt, 1, 1)   b2: (cout,)
    """
    # TODO(synk): groups > 1 not implemented (module default / demo uses groups=1).
    b, cin, d, h, w = x.shape
    cint = w1.shape[0]
    cout = w2.shape[0]
    kh, kw = w1.shape[3], w1.shape[4]
    kt = w2.shape[2]
    st, sh, sw = stride
    pt, ph, pw = padding
    dlt, dlh, dlw = dilation

    hp, wp = h + 2 * ph, w + 2 * pw
    dp = d + 2 * pt
    ho = (hp - (dlh * (kh - 1) + 1)) // sh + 1
    wo = (wp - (dlw * (kw - 1) + 1)) // sw + 1
    do = (dp - (dlt * (kt - 1) + 1)) // st + 1
    wpc = wp * cin
    k1 = kh * wpc
    k1pad = -(-k1 // 128) * 128
    woc_i, woc_o = wo * cint, wo * cout
    f32 = jnp.float32

    if packed_weights is None:
        packed_weights = pack_dual_conv3d_weights(
            w1, b1, w2, b2, h, w, stride=stride, padding=padding, dilation=dilation)
    wsp, b1f, wt, b2f = packed_weights

    # --- input layout: NCDHW -> channels-last, pad h/w, fold (w,cin) into lanes,
    # then h-im2col so the kh taps live in the contraction dim.  Under jit the
    # transpose+pad+slice-concat fuse into the one input-layout copy pass.
    xk = jnp.transpose(x.astype(f32), (0, 2, 3, 4, 1))            # (b, d, h, w, cin)
    xk = jnp.pad(xk, ((0, 0), (0, 0), (ph, ph), (pw, pw), (0, 0)))
    xk = xk.reshape(b, d, hp, wpc)
    cols = [xk[:, :, ky * dlh: ky * dlh + (ho - 1) * sh + 1: sh, :] for ky in range(kh)]
    xcol = jnp.concatenate(cols, axis=-1)                         # (b, d, ho, kh*wpc)
    if k1pad > k1:
        xcol = jnp.pad(xcol, ((0, 0), (0, 0), (0, 0), (0, k1pad - k1)))
    xcol = xcol.reshape(b, d * ho, k1pad)

    # --- VMEM budget (v5e/v6e 128 MiB, v7x 64 MiB per TC) -------------------
    try:
        vmem_cap = int(pltpu.get_tpu_info().vmem_capacity_bytes)
    except Exception:
        vmem_cap = 64 * 1024 * 1024    # v7x per-TC worst case

    def _pb(shape):
        s = list(shape)
        s[-1] = -(-s[-1] // 128) * 128
        s[-2] = -(-s[-2] // 8) * 8
        n = 1
        for v in s:
            n *= int(v)
        return 4 * n

    # Weights/biases are grid-invariant; TODO(synk): single-buffer them
    # (pipeline_mode=pl.Buffered(1)) once validated to halve their footprint.
    w_bytes = 2 * (_pb((k1pad, woc_i)) + _pb((1, woc_i))
                   + _pb((kt * woc_i, woc_o)) + _pb((1, woc_o)))
    per_b = (2 * (_pb((d * ho, k1pad)) + _pb((do * ho, woc_o)))          # dbl-buffered I/O
             + _pb((dp * ho, woc_i)) + _pb((do * ho, kt * woc_i))        # in-kernel temporaries
             + _pb((do * ho, woc_o)))
    budget = (vmem_cap * 3) // 4
    bblk_max = max(1, (budget - w_bytes) // max(per_b, 1))

    # --- grid blocking: as much work per step as possible (big M), but keep
    # >= 2 steps when b >= 2 so both v7x TCs are fed and DMA/compute overlap.
    n_steps = 2 if b >= 2 else 1
    n_steps = max(n_steps, -(-b // bblk_max))
    bblk = -(-b // n_steps)
    n_steps = -(-b // bblk)
    b_pad = n_steps * bblk
    if b_pad > b:
        xcol = jnp.pad(xcol, ((0, b_pad - b), (0, 0), (0, 0)))

    est = w_bytes + bblk * per_b
    vmem_limit = int(min(max(2 * est, 32 * 1024 * 1024), budget))

    kernel = functools.partial(
        _dual_conv3d_kernel, bblk=bblk, d=d, ho=ho, do=do, wo=wo,
        cint=cint, cout=cout, kt=kt, st=st, dlt=dlt, pt=pt, k1pad=k1pad)

    out = pl.pallas_call(
        kernel,
        out_shape=jax.ShapeDtypeStruct((b_pad, do * ho, woc_o), f32),
        grid=(n_steps,),
        in_specs=[
            pl.BlockSpec((bblk, d * ho, k1pad), lambda i: (i, 0, 0)),
            pl.BlockSpec((k1pad, woc_i), lambda i: (0, 0)),
            pl.BlockSpec((1, woc_i), lambda i: (0, 0)),
            pl.BlockSpec((kt * woc_i, woc_o), lambda i: (0, 0)),
            pl.BlockSpec((1, woc_o), lambda i: (0, 0)),
        ],
        out_specs=pl.BlockSpec((bblk, do * ho, woc_o), lambda i: (i, 0, 0)),
        compiler_params=pltpu.CompilerParams(
            dimension_semantics=("parallel",),
            vmem_limit_bytes=vmem_limit),
    )(xcol, wsp, b1f, wt, b2f)

    out = out[:b].reshape(b, do, ho, wo, cout)
    if channels_last_out:
        return out                                     # lane-dense, no extra HBM transpose
    return jnp.transpose(out, (0, 4, 1, 2, 3))         # NCDHW, matches the PyTorch module


# ---------------------------------------------------------------------------
# Pure-JAX reference (mirrors the PyTorch forward_with_2d) for verification.
# ---------------------------------------------------------------------------
def reference_forward(x, w1, b1, w2, b2, *, stride, padding, dilation):
    b, c, d, h, w = x.shape
    x2 = jnp.transpose(x, (0, 2, 1, 3, 4)).reshape(b * d, c, h, w)
    w1s = w1[:, :, 0]
    y = jax.lax.conv_general_dilated(
        x2, w1s, window_strides=(stride[1], stride[2]),
        padding=[(padding[1], padding[1]), (padding[2], padding[2])],
        rhs_dilation=(dilation[1], dilation[2]),
        dimension_numbers=("NCHW", "OIHW", "NCHW"))
    y = y + b1.reshape(1, -1, 1, 1)
    _, cint, ho, wo = y.shape
    y = y.reshape(b, d, cint, ho, wo).transpose(0, 3, 4, 2, 1).reshape(b * ho * wo, cint, d)
    w2s = w2[:, :, :, 0, 0]
    z = jax.lax.conv_general_dilated(
        y, w2s, window_strides=(stride[0],),
        padding=[(padding[0], padding[0])],
        rhs_dilation=(dilation[0],),
        dimension_numbers=("NCH", "OIH", "NCH"))
    z = z + b2.reshape(1, -1, 1)
    cout = z.shape[1]
    z = z.reshape(b, ho, wo, cout, -1).transpose(0, 3, 4, 1, 2)
    return z


if __name__ == "__main__":
    # DualConv3d(in_channels=4, out_channels=8, kernel_size=3, stride=1,
    #            padding=1, dilation=1, groups=1, bias=True)
    in_ch, out_ch = 4, 8
    kt, kh, kw = 3, 3, 3
    stride = (1, 1, 1)
    padding = (1, 1, 1)
    dilation = (1, 1, 1)
    groups = 1
    cint = out_ch if in_ch < out_ch else in_ch    # intermediate_channels

    b, d, h, w = 2, 8, 16, 16

    key = jax.random.PRNGKey(0)
    ka, kb, kc, kd, ke = jax.random.split(key, 5)

    # Deterministic Kaiming-uniform-style init (same bounds as reset_parameters).
    fan_in1 = (in_ch // groups) * 1 * kh * kw
    bound1 = 1.0 / math.sqrt(fan_in1)
    w1 = jax.random.uniform(ka, (cint, in_ch // groups, 1, kh, kw),
                            jnp.float32, -bound1, bound1)
    b1 = jax.random.uniform(kb, (cint,), jnp.float32, -bound1, bound1)

    fan_in2 = (cint // groups) * kt * 1 * 1
    bound2 = 1.0 / math.sqrt(fan_in2)
    w2 = jax.random.uniform(kc, (out_ch, cint // groups, kt, 1, 1),
                            jnp.float32, -bound2, bound2)
    b2 = jax.random.uniform(kd, (out_ch,), jnp.float32, -bound2, bound2)

    x = jax.random.normal(ke, (b, in_ch, d, h, w), jnp.float32)

    # Packed matmul weights computed once (hoisted out of the per-step forward).
    packed = pack_dual_conv3d_weights(w1, b1, w2, b2, h, w,
                                      stride=stride, padding=padding, dilation=dilation)

    @jax.jit
    def fwd(xv, pw):
        return dual_conv3d_forward(xv, w1, b1, w2, b2, stride=stride, padding=padding,
                                   dilation=dilation, packed_weights=pw)

    out = jax.block_until_ready(fwd(x, packed))

    ref = jax.block_until_ready(reference_forward(
        x, w1, b1, w2, b2, stride=stride, padding=padding, dilation=dilation))

    assert out.shape == ref.shape, (out.shape, ref.shape)
    np.testing.assert_allclose(np.asarray(out), np.asarray(ref), rtol=1e-4, atol=2e-4)
    print("KERNEL_OK")
</pallas_src>

<mosaic_0001>
module attributes {stable_mosaic.version = 11 : i64} {
  func.func @_dual_conv3d_kernel(%arg0: i32, %arg1: memref<1x128x256xf32, #tpu.memory_space<vmem>>, %arg2: memref<256x128xf32, #tpu.memory_space<vmem>>, %arg3: memref<1x128xf32, #tpu.memory_space<vmem>>, %arg4: memref<384x128xf32, #tpu.memory_space<vmem>>, %arg5: memref<1x128xf32, #tpu.memory_space<vmem>>, %arg6: memref<1x128x128xf32, #tpu.memory_space<vmem>>) attributes {dimension_semantics = [#tpu.dimension_semantics<parallel>], iteration_bounds = array<i64: 2>, scalar_prefetch = 0 : i64, scratch_operands = 0 : i64, tpu.core_type = #tpu.core_type<tc>, window_params = [{transform_indices = @transform_0, window_bounds = array<i64: 1, 128, 256>}, {pipeline_mode = #tpu.pipeline_mode<synchronous>, transform_indices = @transform_1, window_bounds = array<i64: 256, 128>}, {pipeline_mode = #tpu.pipeline_mode<synchronous>, transform_indices = @transform_2, window_bounds = array<i64: 1, 128>}, {pipeline_mode = #tpu.pipeline_mode<synchronous>, transform_indices = @transform_3, window_bounds = array<i64: 384, 128>}, {pipeline_mode = #tpu.pipeline_mode<synchronous>, transform_indices = @transform_4, window_bounds = array<i64: 1, 128>}, {transform_indices = @transform_5, window_bounds = array<i64: 1, 128, 128>}]} {
    %c0 = arith.constant 0 : index
    %c0_0 = arith.constant 0 : index
    %c0_1 = arith.constant 0 : index
    %0 = vector.load %arg1[%c0, %c0_0, %c0_1] : memref<1x128x256xf32, #tpu.memory_space<vmem>>, vector<1x128x256xf32>
    %1 = vector.shape_cast %0 : vector<1x128x256xf32> to vector<128x256xf32>
    %c0_2 = arith.constant 0 : index
    %c0_3 = arith.constant 0 : index
    %2 = vector.load %arg2[%c0_2, %c0_3] : memref<256x128xf32, #tpu.memory_space<vmem>>, vector<256x128xf32>
    %cst = arith.constant dense<0.000000e+00> : vector<128x128xf32>
    %3 = tpu.matmul %1, %2, %cst {dimension_numbers = #tpu.dot_dimension_numbers<[1], [0], [0], [1], [0, 0, 1, 1], [], []>} : vector<128x256xf32>, vector<256x128xf32>, vector<128x128xf32> -> vector<128x128xf32>
    %c0_4 = arith.constant 0 : index
    %c0_5 = arith.constant 0 : index
    %4 = vector.load %arg3[%c0_4, %c0_5] : memref<1x128xf32, #tpu.memory_space<vmem>>, vector<1x128xf32>
    %5 = vector.broadcast %4 : vector<1x128xf32> to vector<128x128xf32>
    %6 = arith.addf %3, %5 : vector<128x128xf32>
    %7 = vector.shape_cast %6 : vector<128x128xf32> to vector<1x8x16x128xf32>
    %cst_6 = arith.constant 0.000000e+00 : f32
    %8 = vector.broadcast %cst_6 : f32 to vector<1x1x16x128xf32>
    %9 = tpu.concatenate %8, %7, %8 in 1 : vector<1x1x16x128xf32>, vector<1x8x16x128xf32>, vector<1x1x16x128xf32> -> vector<1x10x16x128xf32>
    %10 = vector.extract_strided_slice %9 {offsets = [0, 0, 0, 0], sizes = [1, 8, 16, 128], strides = [1, 1, 1, 1]} : vector<1x10x16x128xf32> to vector<1x8x16x128xf32>
    %11 = vector.extract_strided_slice %9 {offsets = [0, 1, 0, 0], sizes = [1, 8, 16, 128], strides = [1, 1, 1, 1]} : vector<1x10x16x128xf32> to vector<1x8x16x128xf32>
    %12 = vector.extract_strided_slice %9 {offsets = [0, 2, 0, 0], sizes = [1, 8, 16, 128], strides = [1, 1, 1, 1]} : vector<1x10x16x128xf32> to vector<1x8x16x128xf32>
    %13 = tpu.concatenate %10, %11, %12 in 3 : vector<1x8x16x128xf32>, vector<1x8x16x128xf32>, vector<1x8x16x128xf32> -> vector<1x8x16x384xf32>
    %14 = vector.shape_cast %13 : vector<1x8x16x384xf32> to vector<128x384xf32>
    %c0_7 = arith.constant 0 : index
    %c0_8 = arith.constant 0 : index
    %15 = vector.load %arg4[%c0_7, %c0_8] : memref<384x128xf32, #tpu.memory_space<vmem>>, vector<384x128xf32>
    %cst_9 = arith.constant dense<0.000000e+00> : vector<128x128xf32>
    %16 = tpu.matmul %14, %15, %cst_9 {dimension_numbers = #tpu.dot_dimension_numbers<[1], [0], [0], [1], [0, 0, 1, 1], [], []>} : vector<128x384xf32>, vector<384x128xf32>, vector<128x128xf32> -> vector<128x128xf32>
    %c0_10 = arith.constant 0 : index
    %c0_11 = arith.constant 0 : index
    %17 = vector.load %arg5[%c0_10, %c0_11] : memref<1x128xf32, #tpu.memory_space<vmem>>, vector<1x128xf32>
    %18 = vector.broadcast %17 : vector<1x128xf32> to vector<128x128xf32>
    %19 = arith.addf %16, %18 : vector<128x128xf32>
    %20 = vector.shape_cast %19 : vector<128x128xf32> to vector<1x128x128xf32>
    %c0_12 = arith.constant 0 : index
    %c0_13 = arith.constant 0 : index
    %c0_14 = arith.constant 0 : index
    %21 = vector.load %arg6[%c0_12, %c0_13, %c0_14] : memref<1x128x128xf32, #tpu.memory_space<vmem>>, vector<1x128x128xf32>
    tpu.vector_store %arg6[%c0_12, %c0_13, %c0_14], %20 {strides = array<i32>} : memref<1x128x128xf32, #tpu.memory_space<vmem>>, vector<1x128x128xf32>,
    return
  }
  func.func @transform_0(%arg0: i32) -> (i32, i32, i32) {
    %c0_i32 = arith.constant 0 : i32
    %c0_i32_0 = arith.constant 0 : i32
    %c0_i32_1 = arith.constant 0 : i32
    return %arg0, %c0_i32, %c0_i32_0 : i32, i32, i32
  }
  func.func @transform_1(%arg0: i32) -> (i32, i32) {
    %c0_i32 = arith.constant 0 : i32
    %c0_i32_0 = arith.constant 0 : i32
    %c0_i32_1 = arith.constant 0 : i32
    return %c0_i32, %c0_i32_0 : i32, i32
  }
  func.func @transform_2(%arg0: i32) -> (i32, i32) {
    %c0_i32 = arith.constant 0 : i32
    %c0_i32_0 = arith.constant 0 : i32
    %c0_i32_1 = arith.constant 0 : i32
    return %c0_i32, %c0_i32_0 : i32, i32
  }
  func.func @transform_3(%arg0: i32) -> (i32, i32) {
    %c0_i32 = arith.constant 0 : i32
    %c0_i32_0 = arith.constant 0 : i32
    %c0_i32_1 = arith.constant 0 : i32
    return %c0_i32, %c0_i32_0 : i32, i32
  }
  func.func @transform_4(%arg0: i32) -> (i32, i32) {
    %c0_i32 = arith.constant 0 : i32
    %c0_i32_0 = arith.constant 0 : i32
    %c0_i32_1 = arith.constant 0 : i32
    return %c0_i32, %c0_i32_0 : i32, i32
  }
  func.func @transform_5(%arg0: i32) -> (i32, i32, i32) {
    %c0_i32 = arith.constant 0 : i32
    %c0_i32_0 = arith.constant 0 : i32
    %c0_i32_1 = arith.constant 0 : i32
    return %arg0, %c0_i32, %c0_i32_0 : i32, i32, i32
  }
}

</mosaic_0001>

<llo_original>
// kernel: fwd.1
$region0: #{fwd.1}
  #allocation0 [shape = 'u32[]', space=smem, size = 0x4, offset = 0x4, fixed_abs, tag = 'smem constant byte address 0x4 - core index']
  #allocation1 [shape = 'u32[144,128]{1,0:T(1,128)}', space=vmem, size = 0x12000, scoped, tag = 'internal scratch']
  %s0 = inlined_call_operand.vmem [shape: f32[2,128,256], index: 0, kind: input, shape index: {}]
  %s1 = inlined_call_operand.vmem [shape: f32[256,128], index: 1, kind: input, shape index: {}]
  %s2 = inlined_call_operand.vmem [shape: f32[1,128], index: 2, kind: input, shape index: {}]
  %s3 = inlined_call_operand.vmem [shape: f32[384,128], index: 3, kind: input, shape index: {}]
  %s4 = inlined_call_operand.vmem [shape: f32[1,128], index: 4, kind: input, shape index: {}]
  %s5 = inlined_call_operand.vmem [shape: f32[2,128,128], index: 5, kind: output, shape index: {}]
  %s6 = sld [smem:[#allocation0]]
  $region53: #{fwd.1} parent=0
    _
  %s8 = ssub.s32 1, %s6
  %s9 = scalar_select 0, %s8, %s6
  loop: start=0, step=1, limit=4
  $region2: #{fwd.1} parent=0 // loop_pre_header
    _
  $region3: #{fwd.1} parent=0 // loop_header
    %s11 = sphi 0, %s15
    %p12 = scmp.ge.s32.totalorder %s11, 4
    %s21 = sphi 0, %s23
    %s24 = sphi 0, %s21
    %s25 = sphi 0, %s24
    %s41 = sphi 0, %s25
    %s45 = sphi 0, %s45
    %s47 = sphi 0, %s45
    %s48 = sphi 0, %s47
    %s62 = sphi 0, %s48
    %s66 = sphi 0, %s66
    %s68 = sphi 0, %s66
    %s69 = sphi 0, %s68
    %s83 = sphi 0, %s69
    %s87 = sphi 0, %s87
    %s89 = sphi 0, %s87
    %s90 = sphi 0, %s89
    %s104 = sphi 0, %s90
    %s108 = sphi 0, %s108
    %s110 = sphi 0, %s108
    %s111 = sphi 0, %s110
    %s125 = sphi 0, %s111
    %s131 = sphi 0, %s133
    %s134 = sphi 0, %s131
    %s135 = sphi 0, %s134
    %s151 = sphi 0, %s135
  $region4: #{fwd.1} parent=0 // loop_header_branch
    %14 = sbr.rel (%p12) target = $region8
  $region5: #{fwd.1} parent=0 // loop_body
    %s16 = ssub.s32 %s11, 1
    %s17 = ssub.s32 %s11, 2
    %s18 = sadd.s32 %s11, 1
    %s19 = ssub.s32 %s11, %s18
    %p20 = scmp.eq.s32.totalorder %s19, 0
    %s22 = sadd.s32 %s21, 1
    %s23 = scalar_select %p20, %s21, %s22
    %p26 = pneg %p20
    %p27 = scmp.eq.s32.totalorder %s11, 1
    %p28 = por %p26, %p27
    %p29 = scmp.ne.s32.totalorder %s21, %s24
    %p30 = scmp.eq.s32.totalorder %s11, 0
    %p31 = por %p29, %p30
    %p32 = scmp.ne.s32.totalorder %s21, %s24
    %p33 = scmp.eq.s32.totalorder %s16, 1
    %p34 = por %p32, %p33
    %p35 = scmp.ne.s32.totalorder %s24, %s25
    %p36 = scmp.eq.s32.totalorder %s16, 0
    %p37 = por %p35, %p36
    %p38 = scmp.ne.s32.totalorder %s24, %s25
    %p39 = scmp.eq.s32.totalorder %s17, 1
    %p40 = por %p38, %p39
    %p42 = scmp.ne.s32.totalorder %s25, %s41
    %p43 = scmp.eq.s32.totalorder %s17, 0
    %p44 = por %p42, %p43
    %s46 = sadd.s32 %s45, 1
    %p49 = scmp.eq.s32.totalorder %s11, 1
    %p50 = scmp.ne.s32.totalorder %s45, %s47
    %p51 = scmp.eq.s32.totalorder %s11, 0
    %p52 = por %p50, %p51
    %p53 = scmp.ne.s32.totalorder %s45, %s47
    %p54 = scmp.eq.s32.totalorder %s16, 1
    %p55 = por %p53, %p54
    %p56 = scmp.ne.s32.totalorder %s47, %s48
    %p57 = scmp.eq.s32.totalorder %s16, 0
    %p58 = por %p56, %p57
    %p59 = scmp.ne.s32.totalorder %s47, %s48
    %p60 = scmp.eq.s32.totalorder %s17, 1
    %p61 = por %p59, %p60
    %p63 = scmp.ne.s32.totalorder %s48, %s62
    %p64 = scmp.eq.s32.totalorder %s17, 0
    %p65 = por %p63, %p64
    %s67 = sadd.s32 %s66, 1
    %p70 = scmp.eq.s32.totalorder %s11, 1
    %p71 = scmp.ne.s32.totalorder %s66, %s68
    %p72 = scmp.eq.s32.totalorder %s11, 0
    %p73 = por %p71, %p72
    %p74 = scmp.ne.s32.totalorder %s66, %s68
    %p75 = scmp.eq.s32.totalorder %s16, 1
    %p76 = por %p74, %p75
    %p77 = scmp.ne.s32.totalorder %s68, %s69
    %p78 = scmp.eq.s32.totalorder %s16, 0
    %p79 = por %p77, %p78
    %p80 = scmp.ne.s32.totalorder %s68, %s69
    %p81 = scmp.eq.s32.totalorder %s17, 1
    %p82 = por %p80, %p81
    %p84 = scmp.ne.s32.totalorder %s69, %s83
    %p85 = scmp.eq.s32.totalorder %s17, 0
    %p86 = por %p84, %p85
    %s88 = sadd.s32 %s87, 1
    %p91 = scmp.eq.s32.totalorder %s11, 1
    %p92 = scmp.ne.s32.totalorder %s87, %s89
    %p93 = scmp.eq.s32.totalorder %s11, 0
    %p94 = por %p92, %p93
    %p95 = scmp.ne.s32.totalorder %s87, %s89
    %p96 = scmp.eq.s32.totalorder %s16, 1
    %p97 = por %p95, %p96
    %p98 = scmp.ne.s32.totalorder %s89, %s90
    %p99 = scmp.eq.s32.totalorder %s16, 0
    %p100 = por %p98, %p99
    %p101 = scmp.ne.s32.totalorder %s89, %s90
    %p102 = scmp.eq.s32.totalorder %s17, 1
    %p103 = por %p101, %p102
    %p105 = scmp.ne.s32.totalorder %s90, %s104
    %p106 = scmp.eq.s32.totalorder %s17, 0
    %p107 = por %p105, %p106
    %s109 = sadd.s32 %s108, 1
    %p112 = scmp.eq.s32.totalorder %s11, 1
    %p113 = scmp.ne.s32.totalorder %s108, %s110
    %p114 = scmp.eq.s32.totalorder %s11, 0
    %p115 = por %p113, %p114
    %p116 = scmp.ne.s32.totalorder %s108, %s110
    %p117 = scmp.eq.s32.totalorder %s16, 1
    %p118 = por %p116, %p117
    %p119 = scmp.ne.s32.totalorder %s110, %s111
    %p120 = scmp.eq.s32.totalorder %s16, 0
    %p121 = por %p119, %p120
    %p122 = scmp.ne.s32.totalorder %s110, %s111
    %p123 = scmp.eq.s32.totalorder %s17, 1
    %p124 = por %p122, %p123
    %p126 = scmp.ne.s32.totalorder %s111, %s125
    %p127 = scmp.eq.s32.totalorder %s17, 0
    %p128 = por %p126, %p127
    %s129 = ssub.s32 %s11, %s18
    %p130 = scmp.eq.s32.totalorder %s129, 0
    %s132 = sadd.s32 %s131, 1
    %s133 = scalar_select %p130, %s131, %s132
    %p136 = pneg %p130
    %p137 = scmp.eq.s32.totalorder %s11, 1
    %p138 = por %p136, %p137
    %p139 = scmp.ne.s32.totalorder %s131, %s134
    %p140 = scmp.eq.s32.totalorder %s11, 0
    %p141 = por %p139, %p140
    %p142 = scmp.ne.s32.totalorder %s131, %s134
    %p143 = scmp.eq.s32.totalorder %s16, 1
    %p144 = por %p142, %p143
    %p145 = scmp.ne.s32.totalorder %s134, %s135
    %p146 = scmp.eq.s32.totalorder %s16, 0
    %p147 = por %p145, %p146
    %p148 = scmp.ne.s32.totalorder %s134, %s135
    %p149 = scmp.eq.s32.totalorder %s17, 1
    %p150 = por %p148, %p149
    %p152 = scmp.ne.s32.totalorder %s135, %s151
    %p153 = scmp.eq.s32.totalorder %s17, 0
    %p154 = por %p152, %p153
    %p155 = scmp.le.s32.totalorder 1, %s11
    %p156 = scmp.lt.s32.totalorder %s11, 3
    %p157 = pnand %p155, %p156
    %p158 = pneg %p157
    // Predicated region
    $region9: #{fwd.1} parent=5 // pred_check
      _
    $region10: #{fwd.1} parent=5 // pred_check_branch
      %160 = sbr.rel (%p157) target = $region12
    $region11: #{fwd.1} parent=5 // pred_region
      %s161 = ssub.s32 %s11, 1
      // Predicated region
      $region13: #{fwd.1} parent=11 // pred_check
        %p162 = pneg %p58
      $region14: #{fwd.1} parent=11 // pred_check_branch
        %164 = sbr.rel (%p162) target = $region16
      $region15: #{fwd.1} parent=11 // pred_region
        _
      $region16: #{fwd.1} parent=11 // pred_fallthru
        _
      // Predicated region
      $region17: #{fwd.1} parent=11 // pred_check
        %p165 = pneg %p79
      $region18: #{fwd.1} parent=11 // pred_check_branch
        %167 = sbr.rel (%p165) target = $region20
      $region19: #{fwd.1} parent=11 // pred_region
        _
      $region20: #{fwd.1} parent=11 // pred_fallthru
        _
      // Predicated region
      $region21: #{fwd.1} parent=11 // pred_check
        %p168 = pneg %p100
      $region22: #{fwd.1} parent=11 // pred_check_branch
        %170 = sbr.rel (%p168) target = $region24
      $region23: #{fwd.1} parent=11 // pred_region
        _
      $region24: #{fwd.1} parent=11 // pred_fallthru
        _
      // Predicated region
      $region25: #{fwd.1} parent=11 // pred_check
        %p171 = pneg %p121
      $region26: #{fwd.1} parent=11 // pred_check_branch
        %173 = sbr.rel (%p171) target = $region28
      $region27: #{fwd.1} parent=11 // pred_region
        _
      $region28: #{fwd.1} parent=11 // pred_fallthru
        _
    $region12: #{fwd.1} parent=5 // pred_fallthru
      _
    %p174 = scmp.lt.s32.totalorder %s11, 2
    // Predicated region
    $region29: #{fwd.1} parent=5 // pred_check
      %p175 = pneg %p174
    $region30: #{fwd.1} parent=5 // pred_check_branch
      %177 = sbr.rel (%p175) target = $region32
    $region31: #{fwd.1} parent=5 // pred_region
      // Predicated region
      $region33: #{fwd.1} parent=31 // pred_check
        %p178 = pneg %p31
      $region34: #{fwd.1} parent=31 // pred_check_branch
        %180 = sbr.rel (%p178) target = $region36
      $region35: #{fwd.1} parent=31 // pred_region
        %p181 = scmp.lt.s32.totalorder %s11, 1
        %s182 = scalar_select %p181, %s11, 1
        %s183 = smul.addr %s182, 32
        %s184 = smul.addr %s183, 8
        %s185 = scalar_lea.vmem %s0, %s184
      $region36: #{fwd.1} parent=31 // pred_fallthru
        _
    $region32: #{fwd.1} parent=5 // pred_fallthru
      _
    %p186 = scmp.le.s32.totalorder 1, %s11
    %p187 = scmp.lt.s32.totalorder %s11, 3
    %p188 = pnand %p186, %p187
    %p189 = pneg %p188
    // Predicated region
    $region37: #{fwd.1} parent=5 // pred_check
      _
    $region38: #{fwd.1} parent=5 // pred_check_branch
      %191 = sbr.rel (%p188) target = $region40
    $region39: #{fwd.1} parent=5 // pred_region
      %s192 = ssub.s32 %s11, 1
      %p193 = scmp.lt.s32.totalorder %s16, 1
      %s194 = scalar_select %p193, %s16, 1
      %s195 = smul.addr %s194, 32
      %s196 = smul.addr %s195, 8
      %s197 = scalar_lea.vmem %s0, %s196
      %p198 = pneg %p37
      %p199 = pneg %p34
      %p200 = pneg %p58
      %p201 = pneg %p55
      %p202 = pneg %p79
      %p203 = pneg %p76
      %p204 = pneg %p100
      %p205 = pneg %p97
      %p206 = pneg %p121
      %p207 = pneg %p118
      %p208 = pneg %p147
      %p209 = pneg %p144
      %p210 = scmp.lt.s32.totalorder %s16, 1
      %s211 = scalar_select %p210, %s16, 1
      %s212 = smul.addr %s211, 16
      %s213 = smul.addr %s212, 8
      %s214 = scalar_lea.vmem %s5, %s213
      %p215 = scmp.lt.s32.totalorder %s16, 1
      %s216 = scalar_select %p215, %s16, 1
      %s217 = smul.addr %s216, 32
      %s218 = smul.addr %s217, 8
      %s219 = scalar_lea.vmem %s0, %s218
      %p220 = scmp.lt.s32.totalorder %s16, 1
      %s221 = scalar_select %p220, %s16, 1
      %s222 = smul.addr %s221, 16
      %s223 = smul.addr %s222, 8
      %s224 = scalar_lea.vmem %s5, %s223
      %v225 = vld [vmem:[%s219] sm:$0xff]
      %v226 = vld [vmem:[%s219 + $0x8] sm:$0xff]
      %v227 = vld [vmem:[%s219 + $0x10] sm:$0xff]
      %v228 = vld [vmem:[%s219 + $0x18] sm:$0xff]
      %v229 = vld [vmem:[%s219 + $0x20] sm:$0xff]
      %v230 = vld [vmem:[%s219 + $0x28] sm:$0xff]
      %v231 = vld [vmem:[%s219 + $0x30] sm:$0xff]
      %v232 = vld [vmem:[%s219 + $0x38] sm:$0xff]
      %v233 = vld [vmem:[%s219 + $0x40] sm:$0xff]
      %v234 = vld [vmem:[%s219 + $0x48] sm:$0xff]
      %v235 = vld [vmem:[%s219 + $0x50] sm:$0xff]
      %v236 = vld [vmem:[%s219 + $0x58] sm:$0xff]
      %v237 = vld [vmem:[%s219 + $0x60] sm:$0xff]
      %v238 = vld [vmem:[%s219 + $0x68] sm:$0xff]
      %v239 = vld [vmem:[%s219 + $0x70] sm:$0xff]
      %v240 = vld [vmem:[%s219 + $0x78] sm:$0xff]
      %v241 = vld [vmem:[%s219 + $0x80] sm:$0xff]
      %v242 = vld [vmem:[%s219 + $0x88] sm:$0xff]
      %v243 = vld [vmem:[%s219 + $0x90] sm:$0xff]
      %v244 = vld [vmem:[%s219 + $0x98] sm:$0xff]
      %v245 = vld [vmem:[%s219 + $0xa0] sm:$0xff]
      %v246 = vld [vmem:[%s219 + $0xa8] sm:$0xff]
      %v247 = vld [vmem:[%s219 + $0xb0] sm:$0xff]
      %v248 = vld [vmem:[%s219 + $0xb8] sm:$0xff]
      %v249 = vld [vmem:[%s219 + $0xc0] sm:$0xff]
      %v250 = vld [vmem:[%s219 + $0xc8] sm:$0xff]
      %v251 = vld [vmem:[%s219 + $0xd0] sm:$0xff]
      %v252 = vld [vmem:[%s219 + $0xd8] sm:$0xff]
      %v253 = vld [vmem:[%s219 + $0xe0] sm:$0xff]
      %v254 = vld [vmem:[%s219 + $0xe8] sm:$0xff]
      %v255 = vld [vmem:[%s219 + $0xf0] sm:$0xff]
      %v256 = vld [vmem:[%s219 + $0xf8] sm:$0xff]
      %v257 = vld [vmem:[%s1] sm:$0xff]
      %v258 = vld [vmem:[%s1 + $0x8] sm:$0xff]
      %v259 = vld [vmem:[%s1 + $0x10] sm:$0xff]
      %v260 = vld [vmem:[%s1 + $0x18] sm:$0xff]
      %v261 = vld [vmem:[%s1 + $0x20] sm:$0xff]
      %v262 = vld [vmem:[%s1 + $0x28] sm:$0xff]
      %v263 = vld [vmem:[%s1 + $0x30] sm:$0xff]
      %v264 = vld [vmem:[%s1 + $0x38] sm:$0xff]
      %v265 = vld [vmem:[%s1 + $0x40] sm:$0xff]
      %v266 = vld [vmem:[%s1 + $0x48] sm:$0xff]
      %v267 = vld [vmem:[%s1 + $0x50] sm:$0xff]
      %v268 = vld [vmem:[%s1 + $0x58] sm:$0xff]
      %v269 = vld [vmem:[%s1 + $0x60] sm:$0xff]
      %v270 = vld [vmem:[%s1 + $0x68] sm:$0xff]
      %v271 = vld [vmem:[%s1 + $0x70] sm:$0xff]
      %v272 = vld [vmem:[%s1 + $0x78] sm:$0xff]
      %v273 = vld [vmem:[%s1 + $0x80] sm:$0xff]
      %v274 = vld [vmem:[%s1 + $0x88] sm:$0xff]
      %v275 = vld [vmem:[%s1 + $0x90] sm:$0xff]
      %v276 = vld [vmem:[%s1 + $0x98] sm:$0xff]
      %v277 = vld [vmem:[%s1 + $0xa0] sm:$0xff]
      %v278 = vld [vmem:[%s1 + $0xa8] sm:$0xff]
      %v279 = vld [vmem:[%s1 + $0xb0] sm:$0xff]
      %v280 = vld [vmem:[%s1 + $0xb8] sm:$0xff]
      %v281 = vld [vmem:[%s1 + $0xc0] sm:$0xff]
      %v282 = vld [vmem:[%s1 + $0xc8] sm:$0xff]
      %v283 = vld [vmem:[%s1 + $0xd0] sm:$0xff]
      %v284 = vld [vmem:[%s1 + $0xd8] sm:$0xff]
      %v285 = vld [vmem:[%s1 + $0xe0] sm:$0xff]
      %v286 = vld [vmem:[%s1 + $0xe8] sm:$0xff]
      %v287 = vld [vmem:[%s1 + $0xf0] sm:$0xff]
      %v288 = vld [vmem:[%s1 + $0xf8] sm:$0xff]
      %v289 = vld [vmem:[%s2] sm:$0x1]
      %v291 = vlaneseq
      %v292 = vshrl.u32 %v291, 7
      %v293 = vsub.s32 0, %v292
      %v294 = vrot.slane %v289, %v293
      %296 = vmatprep.subr.mxu0 0.0
      %297 = vmatpush1.msra.mxu0 %v257
      %298 = vmatprep.subr.mxu0 0.0
      %299 = vmatpush1.msra.mxu0 %v258
      %300 = vmatprep.subr.mxu0 0.0
      %301 = vmatpush1.msra.mxu0 %v259
      %302 = vmatprep.subr.mxu0 0.0
      %303 = vmatpush1.msra.mxu0 %v260
      %304 = vmatprep.subr.mxu0 0.0
      %305 = vmatpush1.msra.mxu0 %v261
      %306 = vmatprep.subr.mxu0 0.0
      %307 = vmatpush1.msra.mxu0 %v262
      %308 = vmatprep.subr.mxu0 0.0
      %309 = vmatpush1.msra.mxu0 %v263
      %310 = vmatprep.subr.mxu0 0.0
      %311 = vmatpush1.msra.mxu0 %v264
      %312 = vmatprep.subr.mxu0 0.0
      %313 = vmatpush1.msra.mxu0 %v265
      %314 = vmatprep.subr.mxu0 0.0
      %315 = vmatpush1.msra.mxu0 %v266
      %316 = vmatprep.subr.mxu0 0.0
      %317 = vmatpush1.msra.mxu0 %v267
      %318 = vmatprep.subr.mxu0 0.0
      %319 = vmatpush1.msra.mxu0 %v268
      %320 = vmatprep.subr.mxu0 0.0
      %321 = vmatpush1.msra.mxu0 %v269
      %322 = vmatprep.subr.mxu0 0.0
      %323 = vmatpush1.msra.mxu0 %v270
      %324 = vmatprep.subr.mxu0 0.0
      %325 = vmatpush1.msra.mxu0 %v271
      %326 = vmatprep.subr.mxu0 0.0
      %327 = vmatpush1.msra.mxu0 %v272
      %328 = vmatprep.subr.mxu0 0.0
      %329 = vmatpush1.msra.mxu0 %v273
      %330 = vmatprep.subr.mxu0 0.0
      %331 = vmatpush1.msra.mxu0 %v274
      %332 = vmatprep.subr.mxu0 0.0
      %333 = vmatpush1.msra.mxu0 %v275
      %334 = vmatprep.subr.mxu0 0.0
      %335 = vmatpush1.msra.mxu0 %v276
      %336 = vmatprep.subr.mxu0 0.0
      %337 = vmatpush1.msra.mxu0 %v277
      %338 = vmatprep.subr.mxu0 0.0
      %339 = vmatpush1.msra.mxu0 %v278
      %340 = vmatprep.subr.mxu0 0.0
      %341 = vmatpush1.msra.mxu0 %v279
      %342 = vmatprep.subr.mxu0 0.0
      %343 = vmatpush1.msra.mxu0 %v280
      %344 = vmatprep.subr.mxu0 0.0
      %345 = vmatpush1.msra.mxu0 %v281
      %346 = vmatprep.subr.mxu0 0.0
      %347 = vmatpush1.msra.mxu0 %v282
      %348 = vmatprep.subr.mxu0 0.0
      %349 = vmatpush1.msra.mxu0 %v283
      %350 = vmatprep.subr.mxu0 0.0
      %351 = vmatpush1.msra.mxu0 %v284
      %352 = vmatprep.subr.mxu0 0.0
      %353 = vmatpush1.msra.mxu0 %v285
      %354 = vmatprep.subr.mxu0 0.0
      %355 = vmatpush1.msra.mxu0 %v286
      %356 = vmatprep.subr.mxu0 0.0
      %357 = vmatpush1.msra.mxu0 %v287
      %358 = vmatprep.subr.mxu0 0.0
      %359 = vmatpush1.msra.mxu0 %v288
      %360 = vmatprep.mubr.f32.mxu0 %v226
      %361 = vmatmul.mubr.f32.gmra.mrb[0].mxu0 %v225
      %v362 = vpop.f32.mrb[0].mxu0
      %v363 = vadd.f32 %v294, %v362
      %v364 = vpop.f32.mrb[0].mxu0
      %365 = vmatprep.mubr.f32.mxu0 %v228
      %366 = vmatmul.mubr.f32.gmra.mrb[0].mxu0 %v227
      %v367 = vpop.f32.mrb[0].mxu0
      %v368 = vadd.f32 %v294, %v367
      %v369 = vpop.f32.mrb[0].mxu0
      %370 = vmatprep.mubr.f32.mxu0 %v230
      %371 = vmatmul.mubr.f32.gmra.mrb[0].mxu0 %v229
      %v372 = vpop.f32.mrb[0].mxu0
      %v373 = vadd.f32 %v294, %v372
      %v374 = vpop.f32.mrb[0].mxu0
      %375 = vmatprep.mubr.f32.mxu0 %v232
      %376 = vmatmul.mubr.f32.gmra.mrb[0].mxu0 %v231
      %v377 = vpop.f32.mrb[0].mxu0
      %v378 = vadd.f32 %v294, %v377
      %v379 = vpop.f32.mrb[0].mxu0
      %380 = vmatprep.mubr.f32.mxu0 %v234
      %381 = vmatmul.mubr.f32.gmra.mrb[0].mxu0 %v233
      %v382 = vpop.f32.mrb[0].mxu0
      %v383 = vadd.f32 %v294, %v382
      %v384 = vpop.f32.mrb[0].mxu0
      %385 = vmatprep.mubr.f32.mxu0 %v236
      %386 = vmatmul.mubr.f32.gmra.mrb[0].mxu0 %v235
      %v387 = vpop.f32.mrb[0].mxu0
      %v388 = vadd.f32 %v294, %v387
      %v389 = vpop.f32.mrb[0].mxu0
      %390 = vmatprep.mubr.f32.mxu0 %v238
      %391 = vmatmul.mubr.f32.gmra.mrb[0].mxu0 %v237
      %v392 = vpop.f32.mrb[0].mxu0
      %v393 = vadd.f32 %v294, %v392
      %v394 = vpop.f32.mrb[0].mxu0
      %395 = vmatprep.mubr.f32.mxu0 %v240
      %396 = vmatmul.mubr.f32.gmra.mrb[0].mxu0 %v239
      %v397 = vpop.f32.mrb[0].mxu0
      %v398 = vadd.f32 %v294, %v397
      %v399 = vpop.f32.mrb[0].mxu0
      %400 = vmatprep.mubr.f32.mxu0 %v242
      %401 = vmatmul.mubr.f32.gmra.mrb[0].mxu0 %v241
      %v402 = vpop.f32.mrb[0].mxu0
      %v403 = vadd.f32 %v294, %v402
      %v404 = vpop.f32.mrb[0].mxu0
      %405 = vmatprep.mubr.f32.mxu0 %v244
      %406 = vmatmul.mubr.f32.gmra.mrb[0].mxu0 %v243
      %v407 = vpop.f32.mrb[0].mxu0
      %v408 = vadd.f32 %v294, %v407
      %v409 = vpop.f32.mrb[0].mxu0
      %410 = vmatprep.mubr.f32.mxu0 %v246
      %411 = vmatmul.mubr.f32.gmra.mrb[0].mxu0 %v245
      %v412 = vpop.f32.mrb[0].mxu0
      %v413 = vadd.f32 %v294, %v412
      %v414 = vpop.f32.mrb[0].mxu0
      %415 = vmatprep.mubr.f32.mxu0 %v248
      %416 = vmatmul.mubr.f32.gmra.mrb[0].mxu0 %v247
      %v417 = vpop.f32.mrb[0].mxu0
      %v418 = vadd.f32 %v294, %v417
      %v419 = vpop.f32.mrb[0].mxu0
      %420 = vmatprep.mubr.f32.mxu0 %v250
      %421 = vmatmul.mubr.f32.gmra.mrb[0].mxu0 %v249
      %v422 = vpop.f32.mrb[0].mxu0
      %v423 = vadd.f32 %v294, %v422
      %v424 = vpop.f32.mrb[0].mxu0
      %425 = vmatprep.mubr.f32.mxu0 %v252
      %426 = vmatmul.mubr.f32.gmra.mrb[0].mxu0 %v251
      %v427 = vpop.f32.mrb[0].mxu0
      %v428 = vadd.f32 %v294, %v427
      %v429 = vpop.f32.mrb[0].mxu0
      %430 = vmatprep.mubr.f32.mxu0 %v254
      %431 = vmatmul.mubr.f32.gmra.mrb[0].mxu0 %v253
      %v432 = vpop.f32.mrb[0].mxu0
      %v433 = vadd.f32 %v294, %v432
      %v434 = vpop.f32.mrb[0].mxu0
      %435 = vmatprep.mubr.f32.mxu0 %v256
      %436 = vmatmul.mubr.f32.gmra.mrb[0].mxu0 %v255
      %v437 = vpop.f32.mrb[0].mxu0
      %v438 = vadd.f32 %v294, %v437
      %v439 = vpop.f32.mrb[0].mxu0
      %440 = vdwg.mxu0
      %v441 = vld [vmem:[%s3] sm:$0xff]
      %v442 = vld [vmem:[%s3 + $0x8] sm:$0xff]
      %v443 = vld [vmem:[%s3 + $0x10] sm:$0xff]
      %v444 = vld [vmem:[%s3 + $0x18] sm:$0xff]
      %v445 = vld [vmem:[%s3 + $0x20] sm:$0xff]
      %v446 = vld [vmem:[%s3 + $0x28] sm:$0xff]
      %v447 = vld [vmem:[%s3 + $0x30] sm:$0xff]
      %v448 = vld [vmem:[%s3 + $0x38] sm:$0xff]
      %v449 = vld [vmem:[%s3 + $0x40] sm:$0xff]
      %v450 = vld [vmem:[%s3 + $0x48] sm:$0xff]
      %v451 = vld [vmem:[%s3 + $0x50] sm:$0xff]
      %v452 = vld [vmem:[%s3 + $0x58] sm:$0xff]
      %v453 = vld [vmem:[%s3 + $0x60] sm:$0xff]
      %v454 = vld [vmem:[%s3 + $0x68] sm:$0xff]
      %v455 = vld [vmem:[%s3 + $0x70] sm:$0xff]
      %v456 = vld [vmem:[%s3 + $0x78] sm:$0xff]
      %v457 = vld [vmem:[%s3 + $0x80] sm:$0xff]
      %v458 = vld [vmem:[%s3 + $0x88] sm:$0xff]
      %v459 = vld [vmem:[%s3 + $0x90] sm:$0xff]
      %v460 = vld [vmem:[%s3 + $0x98] sm:$0xff]
      %v461 = vld [vmem:[%s3 + $0xa0] sm:$0xff]
      %v462 = vld [vmem:[%s3 + $0xa8] sm:$0xff]
      %v463 = vld [vmem:[%s3 + $0xb0] sm:$0xff]
      %v464 = vld [vmem:[%s3 + $0xb8] sm:$0xff]
      %v465 = vld [vmem:[%s3 + $0xc0] sm:$0xff]
      %v466 = vld [vmem:[%s3 + $0xc8] sm:$0xff]
      %v467 = vld [vmem:[%s3 + $0xd0] sm:$0xff]
      %v468 = vld [vmem:[%s3 + $0xd8] sm:$0xff]
      %v469 = vld [vmem:[%s3 + $0xe0] sm:$0xff]
      %v470 = vld [vmem:[%s3 + $0xe8] sm:$0xff]
      %v471 = vld [vmem:[%s3 + $0xf0] sm:$0xff]
      %v472 = vld [vmem:[%s3 + $0xf8] sm:$0xff]
      %v473 = vld [vmem:[%s3 + $0x100] sm:$0xff]
      %v474 = vld [vmem:[%s3 + $0x108] sm:$0xff]
      %v475 = vld [vmem:[%s3 + $0x110] sm:$0xff]
      %v476 = vld [vmem:[%s3 + $0x118] sm:$0xff]
      %v477 = vld [vmem:[%s3 + $0x120] sm:$0xff]
      %v478 = vld [vmem:[%s3 + $0x128] sm:$0xff]
      %v479 = vld [vmem:[%s3 + $0x130] sm:$0xff]
      %v480 = vld [vmem:[%s3 + $0x138] sm:$0xff]
      %v481 = vld [vmem:[%s3 + $0x140] sm:$0xff]
      %v482 = vld [vmem:[%s3 + $0x148] sm:$0xff]
      %v483 = vld [vmem:[%s3 + $0x150] sm:$0xff]
      %v484 = vld [vmem:[%s3 + $0x158] sm:$0xff]
      %v485 = vld [vmem:[%s3 + $0x160] sm:$0xff]
      %v486 = vld [vmem:[%s3 + $0x168] sm:$0xff]
      %v487 = vld [vmem:[%s3 + $0x170] sm:$0xff]
      %v488 = vld [vmem:[%s3 + $0x178] sm:$0xff]
      %v489 = vld [vmem:[%s4] sm:$0x1]
      %v491 = vlaneseq
      %v492 = vshrl.u32 %v491, 7
      %v493 = vsub.s32 0, %v492
      %v494 = vrot.slane %v489, %v493
      %496 = vmatprep.subr.mxu0 0.0
      %497 = vmatpush1.msra.mxu0 %v441
      %498 = vmatprep.subr.mxu0 0.0
      %499 = vmatpush1.msra.mxu0 %v442
      %500 = vmatprep.subr.mxu0 0.0
      %501 = vmatpush1.msra.mxu0 %v443
      %502 = vmatprep.subr.mxu0 0.0
      %503 = vmatpush1.msra.mxu0 %v444
      %504 = vmatprep.subr.mxu0 0.0
      %505 = vmatpush1.msra.mxu0 %v445
      %506 = vmatprep.subr.mxu0 0.0
      %507 = vmatpush1.msra.mxu0 %v446
      %508 = vmatprep.subr.mxu0 0.0
      %509 = vmatpush1.msra.mxu0 %v447
      %510 = vmatprep.subr.mxu0 0.0
      %511 = vmatpush1.msra.mxu0 %v448
      %512 = vmatprep.subr.mxu0 0.0
      %513 = vmatpush1.msra.mxu0 %v449
      %514 = vmatprep.subr.mxu0 0.0
      %515 = vmatpush1.msra.mxu0 %v450
      %516 = vmatprep.subr.mxu0 0.0
      %517 = vmatpush1.msra.mxu0 %v451
      %518 = vmatprep.subr.mxu0 0.0
      %519 = vmatpush1.msra.mxu0 %v452
      %520 = vmatprep.subr.mxu0 0.0
      %521 = vmatpush1.msra.mxu0 %v453
      %522 = vmatprep.subr.mxu0 0.0
      %523 = vmatpush1.msra.mxu0 %v454
      %524 = vmatprep.subr.mxu0 0.0
      %525 = vmatpush1.msra.mxu0 %v455
      %526 = vmatprep.subr.mxu0 0.0
      %527 = vmatpush1.msra.mxu0 %v456
      %528 = vmatprep.subr.mxu0 0.0
      %529 = vmatpush1.msra.mxu0 %v457
      %530 = vmatprep.subr.mxu0 0.0
      %531 = vmatpush1.msra.mxu0 %v458
      %532 = vmatprep.subr.mxu0 0.0
      %533 = vmatpush1.msra.mxu0 %v459
      %534 = vmatprep.subr.mxu0 0.0
      %535 = vmatpush1.msra.mxu0 %v460
      %536 = vmatprep.subr.mxu0 0.0
      %537 = vmatpush1.msra.mxu0 %v461
      %538 = vmatprep.subr.mxu0 0.0
      %539 = vmatpush1.msra.mxu0 %v462
      %540 = vmatprep.subr.mxu0 0.0
      %541 = vmatpush1.msra.mxu0 %v463
      %542 = vmatprep.subr.mxu0 0.0
      %543 = vmatpush1.msra.mxu0 %v464
      %544 = vmatprep.subr.mxu0 0.0
      %545 = vmatpush1.msra.mxu0 %v465
      %546 = vmatprep.subr.mxu0 0.0
      %547 = vmatpush1.msra.mxu0 %v466
      %548 = vmatprep.subr.mxu0 0.0
      %549 = vmatpush1.msra.mxu0 %v467
      %550 = vmatprep.subr.mxu0 0.0
      %551 = vmatpush1.msra.mxu0 %v468
      %552 = vmatprep.subr.mxu0 0.0
      %553 = vmatpush1.msra.mxu0 %v469
      %554 = vmatprep.subr.mxu0 0.0
      %555 = vmatpush1.msra.mxu0 %v470
      %556 = vmatprep.subr.mxu0 0.0
      %557 = vmatpush1.msra.mxu0 %v471
      %558 = vmatprep.subr.mxu0 0.0
      %559 = vmatpush1.msra.mxu0 %v472
      %560 = vmatprep.mubr.f32.mxu0 %v363
      %561 = vmatmul.mubr.f32.gmra.mrb[0].mxu0 0.0
      %v562 = vpop.f32.mrb[0].mxu0
      %v563 = vadd.f32 %v494, %v562
      %v564 = vpop.f32.mrb[0].mxu0
      %565 = vmatprep.mubr.f32.mxu0 %v368
      %566 = vmatmul.mubr.f32.gmra.mrb[0].mxu0 0.0
      %v567 = vpop.f32.mrb[0].mxu0
      %v568 = vadd.f32 %v494, %v567
      %v569 = vpop.f32.mrb[0].mxu0
      %570 = vmatprep.mubr.f32.mxu0 %v373
      %571 = vmatmul.mubr.f32.gmra.mrb[0].mxu0 %v363
      %v572 = vpop.f32.mrb[0].mxu0
      %v573 = vadd.f32 %v494, %v572
      %v574 = vpop.f32.mrb[0].mxu0
      %575 = vmatprep.mubr.f32.mxu0 %v378
      %576 = vmatmul.mubr.f32.gmra.mrb[0].mxu0 %v368
      %v577 = vpop.f32.mrb[0].mxu0
      %v578 = vadd.f32 %v494, %v577
      %v579 = vpop.f32.mrb[0].mxu0
      %580 = vmatprep.mubr.f32.mxu0 %v383
      %581 = vmatmul.mubr.f32.gmra.mrb[0].mxu0 %v373
      %v582 = vpop.f32.mrb[0].mxu0
      %v583 = vadd.f32 %v494, %v582
      %v584 = vpop.f32.mrb[0].mxu0
      %585 = vmatprep.mubr.f32.mxu0 %v388
      %586 = vmatmul.mubr.f32.gmra.mrb[0].mxu0 %v378
      %v587 = vpop.f32.mrb[0].mxu0
      %v588 = vadd.f32 %v494, %v587
      %v589 = vpop.f32.mrb[0].mxu0
      %590 = vmatprep.mubr.f32.mxu0 %v393
      %591 = vmatmul.mubr.f32.gmra.mrb[0].mxu0 %v383
      %v592 = vpop.f32.mrb[0].mxu0
      %v593 = vadd.f32 %v494, %v592
      %v594 = vpop.f32.mrb[0].mxu0
      %595 = vmatprep.mubr.f32.mxu0 %v398
      %596 = vmatmul.mubr.f32.gmra.mrb[0].mxu0 %v388
      %v597 = vpop.f32.mrb[0].mxu0
      %v598 = vadd.f32 %v494, %v597
      %v599 = vpop.f32.mrb[0].mxu0
      %600 = vmatprep.mubr.f32.mxu0 %v403
      %601 = vmatmul.mubr.f32.gmra.mrb[0].mxu0 %v393
      %v602 = vpop.f32.mrb[0].mxu0
      %v603 = vadd.f32 %v494, %v602
      %v604 = vpop.f32.mrb[0].mxu0
      %605 = vmatprep.mubr.f32.mxu0 %v408
      %606 = vmatmul.mubr.f32.gmra.mrb[0].mxu0 %v398
      %v607 = vpop.f32.mrb[0].mxu0
      %v608 = vadd.f32 %v494, %v607
      %v609 = vpop.f32.mrb[0].mxu0
      %610 = vmatprep.mubr.f32.mxu0 %v413
      %611 = vmatmul.mubr.f32.gmra.mrb[0].mxu0 %v403
      %v612 = vpop.f32.mrb[0].mxu0
      %v613 = vadd.f32 %v494, %v612
      %v614 = vpop.f32.mrb[0].mxu0
      %615 = vmatprep.mubr.f32.mxu0 %v418
      %616 = vmatmul.mubr.f32.gmra.mrb[0].mxu0 %v408
      %v617 = vpop.f32.mrb[0].mxu0
      %v618 = vadd.f32 %v494, %v617
      %v619 = vpop.f32.mrb[0].mxu0
      %620 = vmatprep.mubr.f32.mxu0 %v423
      %621 = vmatmul.mubr.f32.gmra.mrb[0].mxu0 %v413
      %v622 = vpop.f32.mrb[0].mxu0
      %v623 = vadd.f32 %v494, %v622
      %v624 = vpop.f32.mrb[0].mxu0
      %625 = vmatprep.mubr.f32.mxu0 %v428
      %626 = vmatmul.mubr.f32.gmra.mrb[0].mxu0 %v418
      %v627 = vpop.f32.mrb[0].mxu0
      %v628 = vadd.f32 %v494, %v627
      %v629 = vpop.f32.mrb[0].mxu0
      %630 = vmatprep.mubr.f32.mxu0 %v433
      %631 = vmatmul.mubr.f32.gmra.mrb[0].mxu0 %v423
      %v632 = vpop.f32.mrb[0].mxu0
      %v633 = vadd.f32 %v494, %v632
      %v634 = vpop.f32.mrb[0].mxu0
      %635 = vmatprep.mubr.f32.mxu0 %v438
      %636 = vmatmul.mubr.f32.gmra.mrb[0].mxu0 %v428
      %v637 = vpop.f32.mrb[0].mxu0
      %v638 = vadd.f32 %v494, %v637
      %v639 = vpop.f32.mrb[0].mxu0
      %640 = vdwg.mxu0
      %641 = vmatprep.subr.mxu0 0.0
      %642 = vmatpush1.msra.mxu0 %v473
      %643 = vmatprep.subr.mxu0 0.0
      %644 = vmatpush1.msra.mxu0 %v474
      %645 = vmatprep.subr.mxu0 0.0
      %646 = vmatpush1.msra.mxu0 %v475
      %647 = vmatprep.subr.mxu0 0.0
      %648 = vmatpush1.msra.mxu0 %v476
      %649 = vmatprep.subr.mxu0 0.0
      %650 = vmatpush1.msra.mxu0 %v477
      %651 = vmatprep.subr.mxu0 0.0
      %652 = vmatpush1.msra.mxu0 %v478
      %653 = vmatprep.subr.mxu0 0.0
      %654 = vmatpush1.msra.mxu0 %v479
      %655 = vmatprep.subr.mxu0 0.0
      %656 = vmatpush1.msra.mxu0 %v480
      %657 = vmatprep.subr.mxu0 0.0
      %658 = vmatpush1.msra.mxu0 %v481
      %659 = vmatprep.subr.mxu0 0.0
      %660 = vmatpush1.msra.mxu0 %v482
      %661 = vmatprep.subr.mxu0 0.0
      %662 = vmatpush1.msra.mxu0 %v483
      %663 = vmatprep.subr.mxu0 0.0
      %664 = vmatpush1.msra.mxu0 %v484
      %665 = vmatprep.subr.mxu0 0.0
      %666 = vmatpush1.msra.mxu0 %v485
      %667 = vmatprep.subr.mxu0 0.0
      %668 = vmatpush1.msra.mxu0 %v486
      %669 = vmatprep.subr.mxu0 0.0
      %670 = vmatpush1.msra.mxu0 %v487
      %671 = vmatprep.subr.mxu0 0.0
      %672 = vmatpush1.msra.mxu0 %v488
      %673 = vmatprep.subr.mxu0 0.0
      %674 = vmatpush1.msra.mxu0 0.0
      %675 = vmatprep.subr.mxu0 0.0
      %676 = vmatpush1.msra.mxu0 0.0
      %677 = vmatprep.subr.mxu0 0.0
      %678 = vmatpush1.msra.mxu0 0.0
      %679 = vmatprep.subr.mxu0 0.0
      %680 = vmatpush1.msra.mxu0 0.0
      %681 = vmatprep.subr.mxu0 0.0
      %682 = vmatpush1.msra.mxu0 0.0
      %683 = vmatprep.subr.mxu0 0.0
      %684 = vmatpush1.msra.mxu0 0.0
      %685 = vmatprep.subr.mxu0 0.0
      %686 = vmatpush1.msra.mxu0 0.0
      %687 = vmatprep.subr.mxu0 0.0
      %688 = vmatpush1.msra.mxu0 0.0
      %689 = vmatprep.subr.mxu0 0.0
      %690 = vmatpush1.msra.mxu0 0.0
      %691 = vmatprep.subr.mxu0 0.0
      %692 = vmatpush1.msra.mxu0 0.0
      %693 = vmatprep.subr.mxu0 0.0
      %694 = vmatpush1.msra.mxu0 0.0
      %695 = vmatprep.subr.mxu0 0.0
      %696 = vmatpush1.msra.mxu0 0.0
      %697 = vmatprep.subr.mxu0 0.0
      %698 = vmatpush1.msra.mxu0 0.0
      %699 = vmatprep.subr.mxu0 0.0
      %700 = vmatpush1.msra.mxu0 0.0
      %701 = vmatprep.subr.mxu0 0.0
      %702 = vmatpush1.msra.mxu0 0.0
      %703 = vmatprep.subr.mxu0 0.0
      %704 = vmatpush1.msra.mxu0 0.0
      %705 = vmatprep.mubr.f32.mxu0 0.0
      %706 = vmatmul.mubr.f32.gmra.mrb[0].mxu0 %v373
      %v707 = vpop.f32.mrb[0].mxu0
      %v708 = vadd.f32 %v563, %v707
      %v709 = vpop.f32.mrb[0].mxu0
      %710 = vmatprep.mubr.f32.mxu0 0.0
      %711 = vmatmul.mubr.f32.gmra.mrb[0].mxu0 %v378
      %v712 = vpop.f32.mrb[0].mxu0
      %v713 = vadd.f32 %v568, %v712
      %v714 = vpop.f32.mrb[0].mxu0
      %715 = vmatprep.mubr.f32.mxu0 0.0
      %716 = vmatmul.mubr.f32.gmra.mrb[0].mxu0 %v383
      %v717 = vpop.f32.mrb[0].mxu0
      %v718 = vadd.f32 %v573, %v717
      %v719 = vpop.f32.mrb[0].mxu0
      %720 = vmatprep.mubr.f32.mxu0 0.0
      %721 = vmatmul.mubr.f32.gmra.mrb[0].mxu0 %v388
      %v722 = vpop.f32.mrb[0].mxu0
      %v723 = vadd.f32 %v578, %v722
      %v724 = vpop.f32.mrb[0].mxu0
      %725 = vmatprep.mubr.f32.mxu0 0.0
      %726 = vmatmul.mubr.f32.gmra.mrb[0].mxu0 %v393
      %v727 = vpop.f32.mrb[0].mxu0
      %v728 = vadd.f32 %v583, %v727
      %v729 = vpop.f32.mrb[0].mxu0
      %730 = vmatprep.mubr.f32.mxu0 0.0
      %731 = vmatmul.mubr.f32.gmra.mrb[0].mxu0 %v398
      %v732 = vpop.f32.mrb[0].mxu0
      %v733 = vadd.f32 %v588, %v732
      %v734 = vpop.f32.mrb[0].mxu0
      %735 = vmatprep.mubr.f32.mxu0 0.0
      %736 = vmatmul.mubr.f32.gmra.mrb[0].mxu0 %v403
      %v737 = vpop.f32.mrb[0].mxu0
      %v738 = vadd.f32 %v593, %v737
      %v739 = vpop.f32.mrb[0].mxu0
      %740 = vmatprep.mubr.f32.mxu0 0.0
      %741 = vmatmul.mubr.f32.gmra.mrb[0].mxu0 %v408
      %v742 = vpop.f32.mrb[0].mxu0
      %v743 = vadd.f32 %v598, %v742
      %v744 = vpop.f32.mrb[0].mxu0
      %745 = vmatprep.mubr.f32.mxu0 0.0
      %746 = vmatmul.mubr.f32.gmra.mrb[0].mxu0 %v413
      %v747 = vpop.f32.mrb[0].mxu0
      %v748 = vadd.f32 %v603, %v747
      %v749 = vpop.f32.mrb[0].mxu0
      %750 = vmatprep.mubr.f32.mxu0 0.0
      %751 = vmatmul.mubr.f32.gmra.mrb[0].mxu0 %v418
      %v752 = vpop.f32.mrb[0].mxu0
      %v753 = vadd.f32 %v608, %v752
      %v754 = vpop.f32.mrb[0].mxu0
      %755 = vmatprep.mubr.f32.mxu0 0.0
      %756 = vmatmul.mubr.f32.gmra.mrb[0].mxu0 %v423
      %v757 = vpop.f32.mrb[0].mxu0
      %v758 = vadd.f32 %v613, %v757
      %v759 = vpop.f32.mrb[0].mxu0
      %760 = vmatprep.mubr.f32.mxu0 0.0
      %761 = vmatmul.mubr.f32.gmra.mrb[0].mxu0 %v428
      %v762 = vpop.f32.mrb[0].mxu0
      %v763 = vadd.f32 %v618, %v762
      %v764 = vpop.f32.mrb[0].mxu0
      %765 = vmatprep.mubr.f32.mxu0 0.0
      %766 = vmatmul.mubr.f32.gmra.mrb[0].mxu0 %v433
      %v767 = vpop.f32.mrb[0].mxu0
      %v768 = vadd.f32 %v623, %v767
      %v769 = vpop.f32.mrb[0].mxu0
      %770 = vmatprep.mubr.f32.mxu0 0.0
      %771 = vmatmul.mubr.f32.gmra.mrb[0].mxu0 %v438
      %v772 = vpop.f32.mrb[0].mxu0
      %v773 = vadd.f32 %v628, %v772
      %v774 = vpop.f32.mrb[0].mxu0
      %775 = vmatprep.mubr.f32.mxu0 0.0
      %776 = vmatmul.mubr.f32.gmra.mrb[0].mxu0 0.0
      %v777 = vpop.f32.mrb[0].mxu0
      %v778 = vadd.f32 %v633, %v777
      %v779 = vpop.f32.mrb[0].mxu0
      %780 = vmatprep.mubr.f32.mxu0 0.0
      %781 = vmatmul.mubr.f32.gmra.mrb[0].mxu0 0.0
      %v782 = vpop.f32.mrb[0].mxu0
      %v783 = vadd.f32 %v638, %v782
      %v784 = vpop.f32.mrb[0].mxu0
      %785 = vdwg.mxu0
      %786 = vst [vmem:[%s224] sm:$0xff] %v708
      %787 = vst [vmem:[%s224 + $0x8] sm:$0xff] %v713
      %788 = vst [vmem:[%s224 + $0x10] sm:$0xff] %v718
      %789 = vst [vmem:[%s224 + $0x18] sm:$0xff] %v723
      %790 = vst [vmem:[%s224 + $0x20] sm:$0xff] %v728
      %791 = vst [vmem:[%s224 + $0x28] sm:$0xff] %v733
      %792 = vst [vmem:[%s224 + $0x30] sm:$0xff] %v738
      %793 = vst [vmem:[%s224 + $0x38] sm:$0xff] %v743
      %794 = vst [vmem:[%s224 + $0x40] sm:$0xff] %v748
      %795 = vst [vmem:[%s224 + $0x48] sm:$0xff] %v753
      %796 = vst [vmem:[%s224 + $0x50] sm:$0xff] %v758
      %797 = vst [vmem:[%s224 + $0x58] sm:$0xff] %v763
      %798 = vst [vmem:[%s224 + $0x60] sm:$0xff] %v768
      %799 = vst [vmem:[%s224 + $0x68] sm:$0xff] %v773
      %800 = vst [vmem:[%s224 + $0x70] sm:$0xff] %v778
      %801 = vst [vmem:[%s224 + $0x78] sm:$0xff] %v783
      %p802 = scmp.lt.s32.totalorder %s16, 1
      %s803 = scalar_select %p802, %s16, 1
      %s804 = smul.addr %s803, 16
      %s805 = smul.addr %s804, 8
      %s806 = scalar_lea.vmem %s5, %s805
      // Predicated region
      $region41: #{fwd.1} parent=39 // pred_check
        %p807 = pneg %p144
      $region42: #{fwd.1} parent=39 // pred_check_branch
        %809 = sbr.rel (%p807) target = $region44
      $region43: #{fwd.1} parent=39 // pred_region
        _
      $region44: #{fwd.1} parent=39 // pred_fallthru
        _
    $region40: #{fwd.1} parent=5 // pred_fallthru
      _
    %p810 = scmp.le.s32.totalorder 2, %s11
    // Predicated region
    $region45: #{fwd.1} parent=5 // pred_check
      %p811 = pneg %p810
    $region46: #{fwd.1} parent=5 // pred_check_branch
      %813 = sbr.rel (%p811) target = $region48
    $region47: #{fwd.1} parent=5 // pred_region
      %s814 = ssub.s32 %s11, 2
      // Predicated region
      $region49: #{fwd.1} parent=47 // pred_check
        %p815 = pneg %p150
      $region50: #{fwd.1} parent=47 // pred_check_branch
        %817 = sbr.rel (%p815) target = $region52
      $region51: #{fwd.1} parent=47 // pred_region
        %p818 = scmp.lt.s32.totalorder %s17, 1
        %s819 = scalar_select %p818, %s17, 1
        %s820 = smul.addr %s819, 16
        %s821 = smul.addr %s820, 8
        %s822 = scalar_lea.vmem %s5, %s821
      $region52: #{fwd.1} parent=47 // pred_fallthru
        _
    $region48: #{fwd.1} parent=5 // pred_fallthru
      _
  $region6: #{fwd.1} parent=0 // loop_footer
    %s15 = sadd.s32 1, %s11
  $region7: #{fwd.1} parent=0 // loop_footer_branch
    %10 = sbr.rel target = $region3
  $region8: #{fwd.1} parent=0 // loop_exit
    _

</llo_original>
